<compile_context>
chip_gen: v7x
topology: tpu7x:2x2x1
jax: 0.10.0
libtpu: 0.0.40
codegen_flags: <defaults>
</compile_context>

<pallas_src>
import numpy as np
import jax
import jax.numpy as jnp
from jax import lax
from jax.experimental import pallas as pl
from jax.experimental.pallas import tpu as pltpu

VMEM = pltpu.MemorySpace.VMEM


def _vmem_specs(n):
    return [pl.BlockSpec(memory_space=VMEM) for _ in range(n)]


# ---------------- Kernel 1: encoder stand-in -----------------------------------
# TODO(synk): the pretrained EfficientNet-b3 backbone has no clean Pallas
# equivalent (checkpoint weights + depthwise conv stack); it is replaced by a
# deterministic linear projection of the flattened 1xHxW image to n_f features.
def encoder_kernel(x_ref, w_ref, b_ref, o_ref):
    # bf16 MXU operands (native on v6e/v7x), f32 accumulate.
    o_ref[...] = (jnp.dot(x_ref[...].astype(jnp.bfloat16),
                          w_ref[...].astype(jnp.bfloat16),
                          preferred_element_type=jnp.float32)
                  + b_ref[...])


# ---------------- Kernel 2: fused BiLSTM + masked mean/max pool + classifier ---
# Reproduces nn.LSTM(..., bidirectional=True) over a packed batch plus the
# pooling / nn.Linear head, in one pallas_call:
#   * the x @ W_ih projection for BOTH directions is hoisted out of the
#     recurrence as one (T*B, n_f) @ (n_f, 8H) MXU matmul.  Gate columns use a
#     gate-major / direction-minor layout [i_f i_b | f_f f_b | g_f g_b | o_f o_b]
#     so 8H == 128 lanes for H=16 (lane-dense, unmasked).
#   * forward (time s) and backward (time T-1-s) recurrences are interleaved in
#     a single unrolled fori_loop over a merged (B, 2H) state; the recurrent
#     matmul is one (B, 2H) @ (2H, 8H) block-diagonal dot per step.
#   * per-sequence lengths gate the state updates (forward runs 0..len-1, the
#     reverse direction starts at len-1), matching pack/pad_packed_sequence.
#   * masked mean/max pooling is accumulated in registers and the classifier is
#     applied at the end — no (T, B, H) outputs are materialized.
def bilstm_pool_cls_kernel(lens_ref, x_ref, wih_ref, whh_ref, b_ref,
                           wcls_ref, bcls_ref, o_ref, gin_ref):
    B = lens_ref.shape[0]
    TB = x_ref.shape[0]
    T = TB // B
    H8 = wih_ref.shape[1]
    H = H8 // 8
    H2 = 2 * H
    neg_inf = jnp.float32(-jnp.inf)

    # ---- hoisted input projection: one big matmul for all steps & directions.
    gin_ref[...] = (jnp.dot(x_ref[...].astype(jnp.bfloat16),
                            wih_ref[...].astype(jnp.bfloat16),
                            preferred_element_type=jnp.float32)
                    + b_ref[...])                      # merged b_ih + b_hh

    # ---- loop invariants (read / cast / build masks exactly once).
    lens = lens_ref[...]                               # (B, 1) int32
    whh_bf = whh_ref[...].astype(jnp.bfloat16)         # (2H, 8H) block-diagonal
    col8 = lax.broadcasted_iota(jnp.int32, (1, H8), 1)
    fwd_gate_cols = (col8 % H2) < H                    # (1, 8H) forward columns
    col2 = lax.broadcasted_iota(jnp.int32, (1, H2), 1)
    fwd_state_cols = col2 < H                          # (1, 2H) forward half

    zeros = jnp.zeros((B, H2), jnp.float32)
    init = (zeros, zeros, zeros, jnp.full((B, H2), neg_inf, jnp.float32))

    def body(s, carry):
        h, c, acc_sum, acc_max = carry
        t_b = T - 1 - s
        # forward half consumes time s, backward half consumes time T-1-s.
        g_f = gin_ref[pl.ds(s * B, B), :]              # (B, 8H)
        g_b = gin_ref[pl.ds(t_b * B, B), :]            # (B, 8H)
        g_in = jnp.where(fwd_gate_cols, g_f, g_b)
        g = g_in + jnp.dot(h.astype(jnp.bfloat16), whh_bf,
                           preferred_element_type=jnp.float32)
        # PyTorch gate order i, f, g, o; each slice holds [fwd | bwd] lanes.
        i = jax.nn.sigmoid(g[:, 0 * H2:1 * H2])
        f = jax.nn.sigmoid(g[:, 1 * H2:2 * H2])
        gg = jnp.tanh(g[:, 2 * H2:3 * H2])
        o = jax.nn.sigmoid(g[:, 3 * H2:4 * H2])
        c_new = f * c + i * gg
        h_new = o * jnp.tanh(c_new)
        # per-direction validity: forward s < len, backward T-1-s < len.
        valid = jnp.where(fwd_state_cols, s < lens, t_b < lens)   # (B, 2H)
        h = jnp.where(valid, h_new, h)
        c = jnp.where(valid, c_new, c)
        # fused masked pooling: padded steps contribute 0 (sum) / -inf (max).
        acc_sum = acc_sum + jnp.where(valid, h, 0.0)
        acc_max = jnp.maximum(acc_max, jnp.where(valid, h, neg_inf))
        return h, c, acc_sum, acc_max

    _, _, acc_sum, acc_max = lax.fori_loop(0, T, body, init, unroll=True)

    # TODO(synk): zero-length sequences give inf/NaN here, identical to the
    # original module (sum/0 and max over an all -inf mask).
    x_mean = acc_sum / lens.astype(jnp.float32)        # (B, 2H)
    feat = jnp.concatenate([x_mean, acc_max], axis=-1)  # (B, 4H)
    o_ref[...] = (jnp.dot(feat.astype(jnp.bfloat16),
                          wcls_ref[...].astype(jnp.bfloat16),
                          preferred_element_type=jnp.float32)
                  + bcls_ref[...])


# ---------------- weight repacking (host-side, one-time) -----------------------
def pack_lstm_params(params):
    """Rearrange per-direction PyTorch-layout LSTM weights into the fused
    gate-major / direction-minor layout consumed by the kernel."""
    n_f, H4 = params["wih_f"].shape
    H = H4 // 4
    wih = jnp.stack([params["wih_f"].reshape(n_f, 4, H),
                     params["wih_b"].reshape(n_f, 4, H)],
                    axis=2).reshape(n_f, 8 * H)
    b = jnp.stack([params["b_f"].reshape(1, 4, H),
                   params["b_b"].reshape(1, 4, H)],
                  axis=2).reshape(1, 8 * H)
    # block-diagonal recurrent weight: rows [0,H) carry h_fwd, rows [H,2H)
    # carry h_bwd; each only feeds its own direction's gate columns.
    whh = jnp.zeros((2 * H, 4, 2, H), jnp.float32)
    whh = whh.at[:H, :, 0, :].set(params["whh_f"].reshape(H, 4, H))
    whh = whh.at[H:, :, 1, :].set(params["whh_b"].reshape(H, 4, H))
    whh = whh.reshape(2 * H, 8 * H)
    return wih, whh, b


# ---------------- wrapper ------------------------------------------------------
def lstm_forward(x_seqs, params):
    lens = [int(s.shape[0]) for s in x_seqs]
    B = len(lens)
    T_max = max(lens)
    n_f = params["w_enc"].shape[1]
    H = params["whh_f"].shape[0]
    n_classes = params["w_cls"].shape[1]

    # cat all frames along time (== torch.cat(x, 0).unsqueeze(1)) then encode.
    xs = jnp.concatenate(x_seqs, axis=0)              # (N, img, img)
    N = xs.shape[0]
    xs_flat = xs.reshape(N, -1)
    feats = pl.pallas_call(
        encoder_kernel,
        out_shape=jax.ShapeDtypeStruct((N, n_f), jnp.float32),
        in_specs=_vmem_specs(3),
        out_specs=pl.BlockSpec(memory_space=VMEM),
    )(xs_flat, params["w_enc"], params["b_enc"])

    # split + pack_sequence glue: zero-padded time-major tensor (host glue,
    # lens are static Python ints).
    # TODO(synk): bucket sequence lengths in production to avoid one recompile
    # per distinct (lens, T_max) combination.
    cols, off = [], 0
    for l in lens:
        cols.append(jnp.pad(feats[off:off + l], ((0, T_max - l), (0, 0))))
        off += l
    padded = jnp.stack(cols, axis=1)                  # (T_max, B, n_f)
    x2d = padded.reshape(T_max * B, n_f)              # row t*B+b (time-major)
    lens_arr = jnp.asarray(lens, jnp.int32).reshape(B, 1)

    wih, whh, b = pack_lstm_params(params)

    # NOTE: at B=2 a batch grid is degenerate (second-to-last dim < 8), and all
    # operands fit comfortably in VMEM, so the kernel runs grid-less with
    # everything resident; vmem_limit stays well under v7x's 64 MiB per-TC.
    logits = pl.pallas_call(
        bilstm_pool_cls_kernel,
        out_shape=jax.ShapeDtypeStruct((B, n_classes), jnp.float32),
        in_specs=_vmem_specs(7),
        out_specs=pl.BlockSpec(memory_space=VMEM),
        scratch_shapes=[pltpu.VMEM((T_max * B, 8 * H), jnp.float32)],
        compiler_params=pltpu.CompilerParams(vmem_limit_bytes=32 * 1024 * 1024),
    )(lens_arr, x2d, wih, whh, b, params["w_cls"], params["b_cls"])
    return logits


def init_params(key, img=16, n_f=32, n_classes=1):
    n_f2 = 2 * (n_f // 2)          # == n_f for even n_f (matches module)
    H = n_f2 // 2                  # per-direction hidden size
    ks = jax.random.split(key, 10)

    def u(k, shape, bound):
        return jax.random.uniform(k, shape, jnp.float32, -bound, bound)

    kb = 1.0 / np.sqrt(H)
    ke = 1.0 / np.sqrt(img * img)
    kc = 1.0 / np.sqrt(2 * n_f2)
    return dict(
        w_enc=u(ks[0], (img * img, n_f), ke),
        b_enc=u(ks[1], (1, n_f), ke),
        # LSTM weights stored transposed (in, 4H)/(H, 4H); bias = b_ih + b_hh merged
        wih_f=u(ks[2], (n_f, 4 * H), kb),
        whh_f=u(ks[3], (H, 4 * H), kb),
        b_f=u(ks[4], (1, 4 * H), kb),
        wih_b=u(ks[5], (n_f, 4 * H), kb),
        whh_b=u(ks[6], (H, 4 * H), kb),
        b_b=u(ks[7], (1, 4 * H), kb),
        w_cls=u(ks[8], (2 * n_f2, n_classes), kc),
        b_cls=u(ks[9], (1, n_classes), kc),
    )


if __name__ == "__main__":
    key = jax.random.PRNGKey(0)
    k1, k2, kp = jax.random.split(key, 3)
    img = 16
    seq_lens = [8, 6]              # variable-length sequences, like the torch list input
    x_seqs = [
        jax.random.normal(k1, (seq_lens[0], img, img), jnp.float32),
        jax.random.normal(k2, (seq_lens[1], img, img), jnp.float32),
    ]
    params = init_params(kp, img=img, n_f=32, n_classes=1)
    out = lstm_forward(x_seqs, params)
    jax.block_until_ready(out)
    assert out.shape == (2, 1)
    print("KERNEL_OK")
</pallas_src>

<mosaic_0001>
module attributes {stable_mosaic.version = 11 : i64} {
  func.func @encoder_kernel(%arg0: memref<14x256xf32, #tpu.memory_space<vmem>>, %arg1: memref<256x32xf32, #tpu.memory_space<vmem>>, %arg2: memref<1x32xf32, #tpu.memory_space<vmem>>, %arg3: memref<14x32xf32, #tpu.memory_space<vmem>>) attributes {dimension_semantics = [], scalar_prefetch = 0 : i64, scratch_operands = 0 : i64, tpu.core_type = #tpu.core_type<tc>} {
    %c0 = arith.constant 0 : index
    %c0_0 = arith.constant 0 : index
    %0 = vector.load %arg0[%c0, %c0_0] : memref<14x256xf32, #tpu.memory_space<vmem>>, vector<14x256xf32>
    %1 = arith.truncf %0 : vector<14x256xf32> to vector<14x256xbf16>
    %c0_1 = arith.constant 0 : index
    %c0_2 = arith.constant 0 : index
    %2 = vector.load %arg1[%c0_1, %c0_2] : memref<256x32xf32, #tpu.memory_space<vmem>>, vector<256x32xf32>
    %3 = arith.truncf %2 : vector<256x32xf32> to vector<256x32xbf16>
    %cst = arith.constant dense<0.000000e+00> : vector<14x32xf32>
    %4 = tpu.matmul %1, %3, %cst {dimension_numbers = #tpu.dot_dimension_numbers<[1], [0], [0], [1], [0, 0, 1, 1], [], []>} : vector<14x256xbf16>, vector<256x32xbf16>, vector<14x32xf32> -> vector<14x32xf32>
    %c0_3 = arith.constant 0 : index
    %c0_4 = arith.constant 0 : index
    %5 = vector.load %arg2[%c0_3, %c0_4] : memref<1x32xf32, #tpu.memory_space<vmem>>, vector<1x32xf32>
    %6 = vector.broadcast %5 : vector<1x32xf32> to vector<14x32xf32>
    %7 = arith.addf %4, %6 : vector<14x32xf32>
    %c0_5 = arith.constant 0 : index
    %c0_6 = arith.constant 0 : index
    %8 = vector.load %arg3[%c0_5, %c0_6] : memref<14x32xf32, #tpu.memory_space<vmem>>, vector<14x32xf32>
    tpu.vector_store %arg3[%c0_5, %c0_6], %7 {strides = array<i32>} : memref<14x32xf32, #tpu.memory_space<vmem>>, vector<14x32xf32>,
    return
  }
}

</mosaic_0001>

<llo_original>
// kernel: tpu_custom_call.1
$region0: #{tpu_custom_call.1}
  #allocation0 [shape = 'u32[]', space=smem, size = 0x4, offset = 0x4, fixed_abs, tag = 'smem constant byte address 0x4 - core index']
  #allocation1 [shape = 'u32[144,128]{1,0:T(1,128)}', space=vmem, size = 0x12000, scoped, tag = 'internal scratch']
  %s0 = inlined_call_operand.vmem [shape: f32[14,256], index: 0, kind: input, shape index: {}]
  %s1 = inlined_call_operand.vmem [shape: f32[256,32], index: 1, kind: input, shape index: {}]
  %s2 = inlined_call_operand.vmem [shape: f32[1,32], index: 2, kind: input, shape index: {}]
  %s3 = inlined_call_operand.hbm [shape: f32[14,32], index: 3, kind: output, shape index: {}]
  %s4 = sld [smem:[#allocation0]]
  $region22: #{tpu_custom_call.1} parent=0
    _
  %s6 = ssub.s32 1, %s4
  %s7 = scalar_select 0, %s6, %s4
  $region1: #{tpu_custom_call.1} parent=0
    #allocation2 [shape = 'u8[8192]{0}', space=vmem, size = 0x2000, scoped, tag = 'output window, operand 0, single buffered']
    #allocation3 [shape = 's32[1]{0}', space=sflag, size = 0x4, scoped, tag = 'scoped memory for tpu_custom_call.1']
    %8 = vsyncpa [#allocation3], 0
    // Predicated region
    $region2: #{tpu_custom_call.1} parent=1 // pred_check
      _
    $region3: #{tpu_custom_call.1} parent=1 // pred_check_branch
      %10 = sbr.rel (0) target = $region5
    $region4: #{tpu_custom_call.1} parent=1 // pred_region
      _
    $region5: #{tpu_custom_call.1} parent=1 // pred_fallthru
      _
    // Predicated region
    $region6: #{tpu_custom_call.1} parent=1 // pred_check
      _
    $region7: #{tpu_custom_call.1} parent=1 // pred_check_branch
      %12 = sbr.rel (0) target = $region9
    $region8: #{tpu_custom_call.1} parent=1 // pred_region
      _
    $region9: #{tpu_custom_call.1} parent=1 // pred_fallthru
      _
    // Predicated region
    $region10: #{tpu_custom_call.1} parent=1 // pred_check
      _
    $region11: #{tpu_custom_call.1} parent=1 // pred_check_branch
      %14 = sbr.rel (0) target = $region13
    $region12: #{tpu_custom_call.1} parent=1 // pred_region
      _
    $region13: #{tpu_custom_call.1} parent=1 // pred_fallthru
      _
    %v16 = vld [vmem:[%s0] sm:$0xff]
    %v17 = vld [vmem:[%s0 + $0x8] sm:$0xff]
    %v18 = vld [vmem:[%s0 + $0x10] sm:$0x3f]
    %v19 = vld [vmem:[%s0 + $0x18] sm:$0x3f]
    %v20 = vpack.c.bf16 %v18, %v16
    %v21 = vpack.c.bf16 %v19, %v17
    %v22 = vld [vmem:[%s1] sm:$0xff]
    %v23 = vld [vmem:[%s1 + $0x8] sm:$0xff]
    %v24 = vld [vmem:[%s1 + $0x10] sm:$0xff]
    %v25 = vld [vmem:[%s1 + $0x18] sm:$0xff]
    %v26 = vld [vmem:[%s1 + $0x20] sm:$0xff]
    %v27 = vld [vmem:[%s1 + $0x28] sm:$0xff]
    %v28 = vld [vmem:[%s1 + $0x30] sm:$0xff]
    %v29 = vld [vmem:[%s1 + $0x38] sm:$0xff]
    %v30 = vld [vmem:[%s1 + $0x40] sm:$0xff]
    %v31 = vld [vmem:[%s1 + $0x48] sm:$0xff]
    %v32 = vld [vmem:[%s1 + $0x50] sm:$0xff]
    %v33 = vld [vmem:[%s1 + $0x58] sm:$0xff]
    %v34 = vld [vmem:[%s1 + $0x60] sm:$0xff]
    %v35 = vld [vmem:[%s1 + $0x68] sm:$0xff]
    %v36 = vld [vmem:[%s1 + $0x70] sm:$0xff]
    %v37 = vld [vmem:[%s1 + $0x78] sm:$0xff]
    %v38 = vld [vmem:[%s1 + $0x80] sm:$0xff]
    %v39 = vld [vmem:[%s1 + $0x88] sm:$0xff]
    %v40 = vld [vmem:[%s1 + $0x90] sm:$0xff]
    %v41 = vld [vmem:[%s1 + $0x98] sm:$0xff]
    %v42 = vld [vmem:[%s1 + $0xa0] sm:$0xff]
    %v43 = vld [vmem:[%s1 + $0xa8] sm:$0xff]
    %v44 = vld [vmem:[%s1 + $0xb0] sm:$0xff]
    %v45 = vld [vmem:[%s1 + $0xb8] sm:$0xff]
    %v46 = vld [vmem:[%s1 + $0xc0] sm:$0xff]
    %v47 = vld [vmem:[%s1 + $0xc8] sm:$0xff]
    %v48 = vld [vmem:[%s1 + $0xd0] sm:$0xff]
    %v49 = vld [vmem:[%s1 + $0xd8] sm:$0xff]
    %v50 = vld [vmem:[%s1 + $0xe0] sm:$0xff]
    %v51 = vld [vmem:[%s1 + $0xe8] sm:$0xff]
    %v52 = vld [vmem:[%s1 + $0xf0] sm:$0xff]
    %v53 = vld [vmem:[%s1 + $0xf8] sm:$0xff]
    %v54 = vpack.c.bf16 %v23, %v22
    %v55 = vpack.c.bf16 %v25, %v24
    %v56 = vpack.c.bf16 %v27, %v26
    %v57 = vpack.c.bf16 %v29, %v28
    %v58 = vpack.c.bf16 %v31, %v30
    %v59 = vpack.c.bf16 %v33, %v32
    %v60 = vpack.c.bf16 %v35, %v34
    %v61 = vpack.c.bf16 %v37, %v36
    %v62 = vpack.c.bf16 %v39, %v38
    %v63 = vpack.c.bf16 %v41, %v40
    %v64 = vpack.c.bf16 %v43, %v42
    %v65 = vpack.c.bf16 %v45, %v44
    %v66 = vpack.c.bf16 %v47, %v46
    %v67 = vpack.c.bf16 %v49, %v48
    %v68 = vpack.c.bf16 %v51, %v50
    %v69 = vpack.c.bf16 %v53, %v52
    %v70 = vld [vmem:[%s2] sm:$0x1]
    %v72 = vlaneseq
    %v73 = vshrl.u32 %v72, 7
    %v74 = vsub.s32 0, %v73
    %v75 = vrot.slane %v70, %v74
    %77 = vmatprep.subr.bf16.mxu0 0
    %78 = vmatpush1.bf16.msra.mxu0 %v54
    %79 = vmatprep.subr.bf16.mxu0 0
    %80 = vmatpush1.bf16.msra.mxu0 %v55
    %81 = vmatprep.subr.bf16.mxu0 0
    %82 = vmatpush1.bf16.msra.mxu0 %v56
    %83 = vmatprep.subr.bf16.mxu0 0
    %84 = vmatpush1.bf16.msra.mxu0 %v57
    %85 = vmatprep.subr.bf16.mxu0 0
    %86 = vmatpush1.bf16.msra.mxu0 %v58
    %87 = vmatprep.subr.bf16.mxu0 0
    %88 = vmatpush1.bf16.msra.mxu0 %v59
    %89 = vmatprep.subr.bf16.mxu0 0
    %90 = vmatpush1.bf16.msra.mxu0 %v60
    %91 = vmatprep.subr.bf16.mxu0 0
    %92 = vmatpush1.bf16.msra.mxu0 %v61
    %93 = vmatprep.subr.bf16.mxu0 0
    %94 = vmatpush1.bf16.msra.mxu0 %v62
    %95 = vmatprep.subr.bf16.mxu0 0
    %96 = vmatpush1.bf16.msra.mxu0 %v63
    %97 = vmatprep.subr.bf16.mxu0 0
    %98 = vmatpush1.bf16.msra.mxu0 %v64
    %99 = vmatprep.subr.bf16.mxu0 0
    %100 = vmatpush1.bf16.msra.mxu0 %v65
    %101 = vmatprep.subr.bf16.mxu0 0
    %102 = vmatpush1.bf16.msra.mxu0 %v66
    %103 = vmatprep.subr.bf16.mxu0 0
    %104 = vmatpush1.bf16.msra.mxu0 %v67
    %105 = vmatprep.subr.bf16.mxu0 0
    %106 = vmatpush1.bf16.msra.mxu0 %v68
    %107 = vmatprep.subr.bf16.mxu0 0
    %108 = vmatpush1.bf16.msra.mxu0 %v69
    %109 = vmatprep.mubr.bf16.mxu0 %v21
    %110 = vmatmul.mubr.bf16.gmra.mrb[0].mxu0 %v20
    %v111 = vpop.f32.mrb[0].mxu0
    %v112 = vadd.f32 %v75, %v111
    %v113 = vpop.f32.mrb[0].mxu0
    %v114 = vpop.f32.mrb[0].mxu0
    %v115 = vadd.f32 %v75, %v114
    %v116 = vpop.f32.mrb[0].mxu0
    %117 = vdwg.mxu0
    %vm118 = vcmask 261120
    %119 = vst.msk [vmem:[#allocation2] sm:$0xff] %vm118, %v112
    %vm120 = vcmask 259072
    %121 = vst.msk [vmem:[#allocation2 + $0x8] sm:$0x3f] %vm120, %v115
    // Predicated region
    $region14: #{tpu_custom_call.1} parent=1 // pred_check
      _
    $region15: #{tpu_custom_call.1} parent=1 // pred_check_branch
      %123 = sbr.rel (0) target = $region17
    $region16: #{tpu_custom_call.1} parent=1 // pred_region
      %s125 = ssub.s32 256, 256
      %126 = vsyncadd [#allocation3], %s125
      %s127 = sshll.u32 [#allocation2], 4
      %s128 = int_to_ptr.vmem [resolvable:$true] %s127
      %133 = dma.vmem_to_hbm [thread:$0]  %s128, 256, %s3, [#allocation3], 128, 128, 8
    $region17: #{tpu_custom_call.1} parent=1 // pred_fallthru
      _
    // Predicated region
    $region18: #{tpu_custom_call.1} parent=1 // pred_check
      _
    $region19: #{tpu_custom_call.1} parent=1 // pred_check_branch
      %135 = sbr.rel (0) target = $region21
    $region20: #{tpu_custom_call.1} parent=1 // pred_region
      %136 = dma.done [#allocation3], 256
    $region21: #{tpu_custom_call.1} parent=1 // pred_fallthru
      _
    %137 = vsyncpa [#allocation3], 1

</llo_original>
